<compile_context>
chip_gen: v6e
topology: v6e:2x2x1
jax: 0.10.0
libtpu: 0.0.40
codegen_flags: <defaults>
</compile_context>

<pallas_src>
import functools

import jax
import jax.numpy as jnp
from jax import lax
from jax.experimental import pallas as pl
from jax.experimental.pallas import tpu as pltpu


def _mse_from_logits_kernel(
    logits_ref,   # (BN, C, TC) float (any float dtype; upcast to f32)
    target_ref,   # (BN, 1, TC) int32
    out_ref,      # (1, 1) float32 per-batch-group partial sum (resident over j)
    *,
    num_classes: int,
    replace_value: int,
    ignore_index: int,
    total_cols: int,
    tile_cols: int,
    needs_col_mask: bool,
):
    j = pl.program_id(1)

    @pl.when(j == 0)
    def _init():
        out_ref[...] = jnp.zeros_like(out_ref)

    def _accumulate(mask_tail_cols: bool):
        logits = logits_ref[...].astype(jnp.float32)   # (BN, C, TC)
        tgt = target_ref[...]                          # (BN, 1, TC) int32

        if mask_tail_cols:
            col_ids = lax.broadcasted_iota(jnp.int32, logits.shape, 2) + j * tile_cols
            col_valid = col_ids < total_cols
            # Zero the tail columns BEFORE exp so undefined out-of-bounds block
            # contents can never turn into Inf/NaN.
            logits = jnp.where(col_valid, logits, 0.0)

        tgt = jnp.where(tgt == ignore_index, replace_value, tgt)

        # Softmax over the class (sublane) axis.
        m = jnp.max(logits, axis=1, keepdims=True)               # (BN, 1, TC)
        e = jnp.exp(logits - m)
        denom = jnp.sum(e, axis=1, keepdims=True)                # (BN, 1, TC)
        inv = pl.reciprocal(denom, approx=True)                  # EUP seed
        inv = inv * (2.0 - denom * inv)                          # 1 Newton step -> ~f32 exact
        sm = e * inv

        # One-hot via sublane-iota comparison; same iota reused for class mask.
        class_ids = lax.broadcasted_iota(jnp.int32, logits.shape, 1)
        one_hot = (class_ids == tgt).astype(jnp.float32)
        diff2 = (sm - one_hot) ** 2

        valid = class_ids < (num_classes - 1)    # drop last class: loss[:, :-1]
        if mask_tail_cols:
            valid = valid & col_valid
        masked = jnp.where(valid, diff2, 0.0)

        # Per-tile reduction to a single scalar partial (XLU + cheap adds),
        # accumulated into the resident (1,1) output block.
        masked2d = jnp.sum(masked, axis=0)                       # (C, TC)
        out_ref[...] += jnp.sum(masked2d, keepdims=True)         # (1, 1)

    if needs_col_mask:
        last = pl.num_programs(1) - 1

        @pl.when(j < last)
        def _full_tiles():
            _accumulate(False)

        @pl.when(j == last)
        def _tail_tile():
            _accumulate(True)
    else:
        _accumulate(False)


def mse_loss_from_logits(output, target, *, chart="SIC", ignore_index=-100,
                         tile_cols=32768):
    """Pallas TPU implementation of MSELossFromLogits.forward.

    output: (N, C, H, W) float logits (C must match the chart's num_classes)
    target: (N, H, W) integer class ids (may contain ignore_index)
    returns: scalar float32 loss
    """
    if chart == "SIC":
        replace_value, num_classes = 11, 12
    elif chart == "SOD":
        replace_value, num_classes = 6, 7
    elif chart == "FLOE":
        replace_value, num_classes = 7, 8
    else:
        raise NameError(f"The chart '{chart}' is not recognized")

    N, C, H, W = output.shape
    assert C == num_classes, f"channel dim {C} != num_classes {num_classes}"

    cols = H * W
    if cols <= tile_cols:
        # One full-extent spatial tile; fold batch items into the block until
        # each grid step moves ~2 MiB of logits (amortizes per-step overhead).
        tile_cols = cols
        budget_elems = (2 * 1024 * 1024) // 4
        bn = 1
        for d in range(N, 0, -1):
            if N % d == 0 and d * C * cols <= budget_elems:
                bn = d
                break
    else:
        # Lane-aligned tile; ragged tail handled in-kernel on the last tile.
        tile_cols = max(128, (tile_cols // 128) * 128)
        bn = 1

    num_groups = N // bn
    num_tiles = pl.cdiv(cols, tile_cols)
    grid = (num_groups, num_tiles)
    needs_col_mask = (cols % tile_cols) != 0

    # Free reshapes only — no transpose, no padding copies in HBM.
    logits3d = output.reshape(N, C, cols)
    tgt3d = target.reshape(N, 1, cols).astype(jnp.int32)

    kernel = functools.partial(
        _mse_from_logits_kernel,
        num_classes=num_classes,
        replace_value=replace_value,
        ignore_index=ignore_index,
        total_cols=cols,
        tile_cols=tile_cols,
        needs_col_mask=needs_col_mask,
    )

    partial_sums = pl.pallas_call(
        kernel,
        out_shape=jax.ShapeDtypeStruct((num_groups, 1), jnp.float32),
        grid_spec=pltpu.PrefetchScalarGridSpec(
            num_scalar_prefetch=0,
            grid=grid,
            in_specs=[
                pl.BlockSpec((bn, C, tile_cols), lambda n, j: (n, 0, j)),
                pl.BlockSpec((bn, 1, tile_cols), lambda n, j: (n, 0, j)),
            ],
            out_specs=pl.BlockSpec((1, 1), lambda n, j: (n, 0)),
        ),
        compiler_params=pltpu.CompilerParams(
            dimension_semantics=("parallel", "arbitrary")),
    )(logits3d, tgt3d)

    denom = float(N * (C - 1) * H * W)   # mean over loss[:, :-1, :, :]
    return jnp.sum(partial_sums) / denom


def _reference(output, target, *, replace_value, num_classes, ignore_index):
    # pure-JAX reference mirroring the PyTorch forward
    tgt = jnp.where(target == ignore_index, replace_value, target)
    one_hot = jax.nn.one_hot(tgt, num_classes, dtype=output.dtype)  # (N,H,W,C)
    one_hot = jnp.transpose(one_hot, (0, 3, 1, 2))                  # (N,C,H,W)
    sm = jax.nn.softmax(output, axis=1)
    loss = (sm - one_hot) ** 2
    return jnp.mean(loss[:, :-1, :, :])


if __name__ == "__main__":
    key = jax.random.PRNGKey(0)

    # --- Test 1: small spatial -> batch folding, single full-extent tile ----
    k1, k2, k3 = jax.random.split(jax.random.fold_in(key, 0), 3)
    N, C, H, W = 2, 12, 16, 16            # chart='SIC' -> 12 classes
    output = jax.random.normal(k1, (N, C, H, W), dtype=jnp.float32)
    target = jax.random.randint(k2, (N, H, W), 0, C, dtype=jnp.int32)
    ignore_mask = jax.random.bernoulli(k3, 0.1, (N, H, W))
    target = jnp.where(ignore_mask, -100, target)

    loss = mse_loss_from_logits(output, target, chart="SIC", ignore_index=-100)
    loss = jax.block_until_ready(loss)
    ref = _reference(output, target, replace_value=11, num_classes=12,
                     ignore_index=-100)
    assert jnp.allclose(loss, ref, rtol=1e-5, atol=1e-6), (loss, ref)

    # --- Test 2: multi-tile spatial axis with a ragged tail ------------------
    k1, k2, k3 = jax.random.split(jax.random.fold_in(key, 1), 3)
    N, C, H, W = 2, 12, 24, 40            # cols=960, tile=128 -> 8 tiles, 64-col tail
    output = jax.random.normal(k1, (N, C, H, W), dtype=jnp.float32)
    target = jax.random.randint(k2, (N, H, W), 0, C, dtype=jnp.int32)
    ignore_mask = jax.random.bernoulli(k3, 0.1, (N, H, W))
    target = jnp.where(ignore_mask, -100, target)

    loss = mse_loss_from_logits(output, target, chart="SIC", ignore_index=-100,
                                tile_cols=128)
    loss = jax.block_until_ready(loss)
    ref = _reference(output, target, replace_value=11, num_classes=12,
                     ignore_index=-100)
    assert jnp.allclose(loss, ref, rtol=1e-5, atol=1e-6), (loss, ref)

    print("KERNEL_OK")
</pallas_src>

<mosaic_0001>
module attributes {stable_mosaic.version = 11 : i64} {
  func.func @_mse_from_logits_kernel(%arg0: i32, %arg1: i32, %arg2: memref<2x12x256xf32, #tpu.memory_space<vmem>>, %arg3: memref<2x1x256xi32, #tpu.memory_space<vmem>>, %arg4: memref<1x1xf32, #tpu.memory_space<vmem>>) attributes {dimension_semantics = [#tpu.dimension_semantics<parallel>, #tpu.dimension_semantics<arbitrary>], iteration_bounds = array<i64: 1, 1>, scalar_prefetch = 0 : i64, scratch_operands = 0 : i64, tpu.core_type = #tpu.core_type<tc>, window_params = [{transform_indices = @transform_0, window_bounds = array<i64: 2, 12, 256>}, {transform_indices = @transform_1, window_bounds = array<i64: 2, 1, 256>}, {transform_indices = @transform_2, window_bounds = array<i64: 1, 1>}]} {
    %c0_i32 = arith.constant 0 : i32
    %0 = arith.cmpi eq, %arg1, %c0_i32 : i32
    %1 = arith.extui %0 : i1 to i32
    %c0_i32_0 = arith.constant 0 : i32
    %2 = arith.cmpi ne, %1, %c0_i32_0 : i32
    scf.if %2 {
      %cst_16 = arith.constant 0.000000e+00 : f32
      %43 = vector.broadcast %cst_16 : f32 to vector<1x1xf32>
      %c0_17 = arith.constant 0 : index
      %c0_18 = arith.constant 0 : index
      %44 = vector.load %arg4[%c0_17, %c0_18] : memref<1x1xf32, #tpu.memory_space<vmem>>, vector<1x1xf32>
      tpu.vector_store %arg4[%c0_17, %c0_18], %43 {strides = array<i32>} : memref<1x1xf32, #tpu.memory_space<vmem>>, vector<1x1xf32>,
    } else {
    }
    %c0 = arith.constant 0 : index
    %c0_1 = arith.constant 0 : index
    %c0_2 = arith.constant 0 : index
    %3 = vector.load %arg2[%c0, %c0_1, %c0_2] : memref<2x12x256xf32, #tpu.memory_space<vmem>>, vector<2x12x256xf32>
    %c0_3 = arith.constant 0 : index
    %c0_4 = arith.constant 0 : index
    %c0_5 = arith.constant 0 : index
    %4 = vector.load %arg3[%c0_3, %c0_4, %c0_5] : memref<2x1x256xi32, #tpu.memory_space<vmem>>, vector<2x1x256xi32>
    %c-100_i32 = arith.constant -100 : i32
    %5 = vector.broadcast %c-100_i32 : i32 to vector<2x1x256xi32>
    %6 = arith.cmpi eq, %4, %5 : vector<2x1x256xi32>
    %c11_i32 = arith.constant 11 : i32
    %7 = vector.broadcast %c11_i32 : i32 to vector<2x1x256xi32>
    %8 = arith.select %6, %7, %4 : vector<2x1x256xi1>, vector<2x1x256xi32>
    %cst = arith.constant dense<0xFF800000> : vector<2x256xf32>
    %9 = vector.multi_reduction <maximumf>, %3, %cst [1] : vector<2x12x256xf32> to vector<2x256xf32>
    %10 = vector.shape_cast %9 : vector<2x256xf32> to vector<2x1x256xf32>
    %11 = vector.broadcast %10 : vector<2x1x256xf32> to vector<2x12x256xf32>
    %12 = arith.subf %3, %11 : vector<2x12x256xf32>
    %13 = math.exp %12 : vector<2x12x256xf32>
    %cst_6 = arith.constant dense<0.000000e+00> : vector<2x256xf32>
    %14 = vector.multi_reduction <add>, %13, %cst_6 [1] : vector<2x12x256xf32> to vector<2x256xf32>
    %15 = vector.shape_cast %14 : vector<2x256xf32> to vector<2x1x256xf32>
    %16 = tpu.reciprocal %15 {approx = true} : vector<2x1x256xf32> -> vector<2x1x256xf32>
    %17 = arith.mulf %15, %16 : vector<2x1x256xf32>
    %cst_7 = arith.constant 2.000000e+00 : f32
    %18 = vector.broadcast %cst_7 : f32 to vector<2x1x256xf32>
    %19 = arith.subf %18, %17 : vector<2x1x256xf32>
    %20 = arith.mulf %16, %19 : vector<2x1x256xf32>
    %21 = vector.broadcast %20 : vector<2x1x256xf32> to vector<2x12x256xf32>
    %22 = arith.mulf %13, %21 : vector<2x12x256xf32>
    %23 = tpu.iota {dimensions = array<i32: 1>} : vector<2x12x256xi32>
    %24 = vector.broadcast %8 : vector<2x1x256xi32> to vector<2x12x256xi32>
    %25 = arith.cmpi eq, %23, %24 : vector<2x12x256xi32>
    %26 = arith.extui %25 : vector<2x12x256xi1> to vector<2x12x256xi32>
    %27 = arith.sitofp %26 : vector<2x12x256xi32> to vector<2x12x256xf32>
    %28 = arith.subf %22, %27 : vector<2x12x256xf32>
    %29 = arith.mulf %28, %28 : vector<2x12x256xf32>
    %c11_i32_8 = arith.constant 11 : i32
    %30 = vector.broadcast %c11_i32_8 : i32 to vector<2x12x256xi32>
    %31 = arith.cmpi slt, %23, %30 : vector<2x12x256xi32>
    %cst_9 = arith.constant 0.000000e+00 : f32
    %32 = vector.broadcast %cst_9 : f32 to vector<2x12x256xf32>
    %33 = arith.select %31, %29, %32 : vector<2x12x256xi1>, vector<2x12x256xf32>
    %cst_10 = arith.constant dense<0.000000e+00> : vector<12x256xf32>
    %34 = vector.multi_reduction <add>, %33, %cst_10 [0] : vector<2x12x256xf32> to vector<12x256xf32>
    %c0_11 = arith.constant 0 : index
    %c0_12 = arith.constant 0 : index
    %35 = vector.load %arg4[%c0_11, %c0_12] : memref<1x1xf32, #tpu.memory_space<vmem>>, vector<1x1xf32>
    %36 = vector.shape_cast %34 : vector<12x256xf32> to vector<1x12x256xf32>
    %cst_13 = arith.constant dense<0.000000e+00> : vector<1xf32>
    %37 = vector.multi_reduction <add>, %36, %cst_13 [1, 2] : vector<1x12x256xf32> to vector<1xf32>
    %38 = vector.shape_cast %37 : vector<1xf32> to vector<1x1x1xf32>
    %39 = vector.extract %38[0, 0, 0] : f32 from vector<1x1x1xf32>
    %40 = vector.broadcast %39 : f32 to vector<1x1xf32>
    %41 = arith.addf %35, %40 : vector<1x1xf32>
    %c0_14 = arith.constant 0 : index
    %c0_15 = arith.constant 0 : index
    %42 = vector.load %arg4[%c0_14, %c0_15] : memref<1x1xf32, #tpu.memory_space<vmem>>, vector<1x1xf32>
    tpu.vector_store %arg4[%c0_14, %c0_15], %41 {strides = array<i32>} : memref<1x1xf32, #tpu.memory_space<vmem>>, vector<1x1xf32>,
    return
  }
  func.func @transform_0(%arg0: i32, %arg1: i32) -> (i32, i32, i32) {
    %c0_i32 = arith.constant 0 : i32
    %c0_i32_0 = arith.constant 0 : i32
    return %arg0, %c0_i32, %arg1 : i32, i32, i32
  }
  func.func @transform_1(%arg0: i32, %arg1: i32) -> (i32, i32, i32) {
    %c0_i32 = arith.constant 0 : i32
    %c0_i32_0 = arith.constant 0 : i32
    return %arg0, %c0_i32, %arg1 : i32, i32, i32
  }
  func.func @transform_2(%arg0: i32, %arg1: i32) -> (i32, i32) {
    %c0_i32 = arith.constant 0 : i32
    %c0_i32_0 = arith.constant 0 : i32
    return %arg0, %c0_i32 : i32, i32
  }
}

</mosaic_0001>

<llo_original>
// kernel: tpu_custom_call.1
$region0: #{tpu_custom_call.1}
  #allocation0 [shape = 'u32[]', space=smem, size = 0x4, offset = 0x4, fixed_abs, tag = 'smem constant byte address 0x4 - core index']
  #allocation1 [shape = 'u32[144,128]{1,0:T(1,128)}', space=vmem, size = 0x12000, scoped, tag = 'internal scratch']
  %s0 = inlined_call_operand.vmem [shape: f32[2,12,256], index: 0, kind: input, shape index: {}]
  %s1 = inlined_call_operand.vmem [shape: s32[2,1,256], index: 1, kind: input, shape index: {}]
  %s2 = inlined_call_operand.hbm [shape: f32[1,1], index: 2, kind: output, shape index: {}]
  %s3 = sld [smem:[#allocation0]]
  $region22: #{tpu_custom_call.1} parent=0
    _
  %s5 = ssub.s32 1, %s3
  %s6 = scalar_select 0, %s5, %s3
  $region1: #{tpu_custom_call.1} parent=0
    #allocation2 [shape = 'u8[512]{0}', space=vmem, size = 0x400, scoped, tag = 'output window, operand 0, single buffered']
    #allocation3 [shape = 's32[1]{0}', space=sflag, size = 0x4, scoped, tag = 'scoped memory for tpu_custom_call.1']
    %7 = vsyncpa [#allocation3], 0
    // Predicated region
    $region2: #{tpu_custom_call.1} parent=1 // pred_check
      _
    $region3: #{tpu_custom_call.1} parent=1 // pred_check_branch
      %9 = sbr.rel (0) target = $region5
    $region4: #{tpu_custom_call.1} parent=1 // pred_region
      _
    $region5: #{tpu_custom_call.1} parent=1 // pred_fallthru
      _
    // Predicated region
    $region6: #{tpu_custom_call.1} parent=1 // pred_check
      _
    $region7: #{tpu_custom_call.1} parent=1 // pred_check_branch
      %11 = sbr.rel (0) target = $region9
    $region8: #{tpu_custom_call.1} parent=1 // pred_region
      _
    $region9: #{tpu_custom_call.1} parent=1 // pred_fallthru
      _
    %p12 = scmp.eq.s32.totalorder 0, 0
    // Predicated region
    $region10: #{tpu_custom_call.1} parent=1 // pred_check
      %p13 = pneg %p12
    $region11: #{tpu_custom_call.1} parent=1 // pred_check_branch
      %15 = sbr.rel (%p13) target = $region13
    $region12: #{tpu_custom_call.1} parent=1 // pred_region
      %vm16 = vcmask 0
      %17 = vst.msk [vmem:[#allocation2] sm:$0x1] %vm16, 0.0
    $region13: #{tpu_custom_call.1} parent=1 // pred_fallthru
      _
    %v18 = vld [vmem:[%s0] sm:$0xff]
    %v19 = vld [vmem:[%s0 + $0x8] sm:$0xff]
    %v20 = vld [vmem:[%s0 + $0x10] sm:$0xf]
    %v21 = vld [vmem:[%s0 + $0x18] sm:$0xf]
    %v22 = vld [vmem:[%s0 + $0x20] sm:$0xff]
    %v23 = vld [vmem:[%s0 + $0x28] sm:$0xff]
    %v24 = vld [vmem:[%s0 + $0x30] sm:$0xf]
    %v25 = vld [vmem:[%s0 + $0x38] sm:$0xf]
    %v26 = vld [vmem:[%s1] sm:$0x3]
    %v27 = vld [vmem:[%s1 + $0x2] sm:$0x3]
    %vm28 = vcmp.eq.s32.totalorder %v26, 4294967196
    %vm29 = vcmp.eq.s32.totalorder %v27, 4294967196
    %v30 = vsel %vm28, 11, %v26
    %v31 = vsel %vm29, 11, %v27
    %vm32 = vcmask 1043456
    %v33 = vsel %vm32, %v20, -inf
    %v34 = vmax.f32 %v18, %v33
    %v35 = vrot.slane %v34, 4
    %v36 = vmax.f32 %v34, %v35
    %v37 = vrot.slane %v36, 2
    %v38 = vmax.f32 %v36, %v37
    %v39 = vrot.slane %v38, 1
    %v40 = vmax.f32 %v38, %v39
    %v41 = vsel %vm32, %v21, -inf
    %v42 = vmax.f32 %v19, %v41
    %v43 = vrot.slane %v42, 4
    %v44 = vmax.f32 %v42, %v43
    %v45 = vrot.slane %v44, 2
    %v46 = vmax.f32 %v44, %v45
    %v47 = vrot.slane %v46, 1
    %v48 = vmax.f32 %v46, %v47
    %v49 = vsel %vm32, %v24, -inf
    %v50 = vmax.f32 %v22, %v49
    %v51 = vrot.slane %v50, 4
    %v52 = vmax.f32 %v50, %v51
    %v53 = vrot.slane %v52, 2
    %v54 = vmax.f32 %v52, %v53
    %v55 = vrot.slane %v54, 1
    %v56 = vmax.f32 %v54, %v55
    %v57 = vsel %vm32, %v25, -inf
    %v58 = vmax.f32 %v23, %v57
    %v59 = vrot.slane %v58, 4
    %v60 = vmax.f32 %v58, %v59
    %v61 = vrot.slane %v60, 2
    %v62 = vmax.f32 %v60, %v61
    %v63 = vrot.slane %v62, 1
    %v64 = vmax.f32 %v62, %v63
    %v65 = vsub.f32 %v18, %v40
    %v66 = vsub.f32 %v19, %v48
    %v67 = vsub.f32 %v20, %v40
    %v68 = vsub.f32 %v21, %v48
    %v69 = vsub.f32 %v22, %v56
    %v70 = vsub.f32 %v23, %v64
    %v71 = vsub.f32 %v24, %v56
    %v72 = vsub.f32 %v25, %v64
    %v73 = vmul.f32 %v65, 1.442695
    %v74 = vpow.pop %v73
    %v75 = vmul.f32 %v66, 1.442695
    %v76 = vpow.pop %v75
    %v77 = vmul.f32 %v67, 1.442695
    %v78 = vpow.pop %v77
    %v79 = vmul.f32 %v68, 1.442695
    %v80 = vpow.pop %v79
    %v81 = vmul.f32 %v69, 1.442695
    %v82 = vpow.pop %v81
    %v83 = vmul.f32 %v70, 1.442695
    %v84 = vpow.pop %v83
    %v85 = vmul.f32 %v71, 1.442695
    %v86 = vpow.pop %v85
    %v87 = vmul.f32 %v72, 1.442695
    %v88 = vpow.pop %v87
    %v89 = vsel %vm32, %v78, 0.0
    %v90 = vadd.f32 %v74, %v89
    %v91 = vrot.slane %v90, 4
    %v92 = vadd.f32 %v90, %v91
    %v93 = vrot.slane %v92, 2
    %v94 = vadd.f32 %v92, %v93
    %v95 = vrot.slane %v94, 1
    %v96 = vadd.f32 %v94, %v95
    %v97 = vsel %vm32, %v80, 0.0
    %v98 = vadd.f32 %v76, %v97
    %v99 = vrot.slane %v98, 4
    %v100 = vadd.f32 %v98, %v99
    %v101 = vrot.slane %v100, 2
    %v102 = vadd.f32 %v100, %v101
    %v103 = vrot.slane %v102, 1
    %v104 = vadd.f32 %v102, %v103
    %v105 = vsel %vm32, %v86, 0.0
    %v106 = vadd.f32 %v82, %v105
    %v107 = vrot.slane %v106, 4
    %v108 = vadd.f32 %v106, %v107
    %v109 = vrot.slane %v108, 2
    %v110 = vadd.f32 %v108, %v109
    %v111 = vrot.slane %v110, 1
    %v112 = vadd.f32 %v110, %v111
    %v113 = vsel %vm32, %v88, 0.0
    %v114 = vadd.f32 %v84, %v113
    %v115 = vrot.slane %v114, 4
    %v116 = vadd.f32 %v114, %v115
    %v117 = vrot.slane %v116, 2
    %v118 = vadd.f32 %v116, %v117
    %v119 = vrot.slane %v118, 1
    %v120 = vadd.f32 %v118, %v119
    %v121 = vrcp.pop %v96
    %v122 = vrcp.pop %v104
    %v123 = vrcp.pop %v112
    %v124 = vrcp.pop %v120
    %v125 = vmul.f32 %v96, %v121
    %v126 = vmul.f32 %v104, %v122
    %v127 = vmul.f32 %v112, %v123
    %v128 = vmul.f32 %v120, %v124
    %v129 = vsub.f32 2.0, %v125
    %v130 = vsub.f32 2.0, %v126
    %v131 = vsub.f32 2.0, %v127
    %v132 = vsub.f32 2.0, %v128
    %v133 = vmul.f32 %v121, %v129
    %v134 = vmul.f32 %v122, %v130
    %v135 = vmul.f32 %v123, %v131
    %v136 = vmul.f32 %v124, %v132
    %v137 = vmul.f32 %v74, %v133
    %v138 = vmul.f32 %v76, %v134
    %v139 = vmul.f32 %v78, %v133
    %v140 = vmul.f32 %v80, %v134
    %v141 = vmul.f32 %v82, %v135
    %v142 = vmul.f32 %v84, %v136
    %v143 = vmul.f32 %v86, %v135
    %v144 = vmul.f32 %v88, %v136
    %v145 = vlaneseq
    %v146 = vshrl.u32 %v145, 7
    %v147 = vadd.s32 %v146, 8
    %v148 = vlaneseq
    %v149 = vshrl.u32 %v148, 7
    %v150 = vsub.s32 0, %v149
    %v151 = vrot.slane %v30, %v150
    %v152 = vlaneseq
    %v153 = vshrl.u32 %v152, 7
    %v154 = vsub.s32 1, %v153
    %v155 = vrot.slane %v30, %v154
    %v156 = vlaneseq
    %v157 = vshrl.u32 %v156, 7
    %v158 = vsub.s32 0, %v157
    %v159 = vrot.slane %v31, %v158
    %v160 = vlaneseq
    %v161 = vshrl.u32 %v160, 7
    %v162 = vsub.s32 1, %v161
    %v163 = vrot.slane %v31, %v162
    %vm164 = vcmp.eq.s32.totalorder %v146, %v151
    %vm165 = vcmp.eq.s32.totalorder %v146, %v155
    %vm166 = vcmp.eq.s32.totalorder %v147, %v151
    %vm167 = vcmp.eq.s32.totalorder %v147, %v155
    %vm168 = vcmp.eq.s32.totalorder %v146, %v159
    %vm169 = vcmp.eq.s32.totalorder %v146, %v163
    %vm170 = vcmp.eq.s32.totalorder %v147, %v159
    %vm171 = vcmp.eq.s32.totalorder %v147, %v163
    %v172 = vsel %vm164, 1, 0
    %v173 = vsel %vm165, 1, 0
    %v174 = vsel %vm166, 1, 0
    %v175 = vsel %vm167, 1, 0
    %v176 = vsel %vm168, 1, 0
    %v177 = vsel %vm169, 1, 0
    %v178 = vsel %vm170, 1, 0
    %v179 = vsel %vm171, 1, 0
    %v180 = vcvt.s32.f32 %v172
    %v181 = vcvt.s32.f32 %v173
    %v182 = vcvt.s32.f32 %v174
    %v183 = vcvt.s32.f32 %v175
    %v184 = vcvt.s32.f32 %v176
    %v185 = vcvt.s32.f32 %v177
    %v186 = vcvt.s32.f32 %v178
    %v187 = vcvt.s32.f32 %v179
    %v188 = vsub.f32 %v137, %v180
    %v189 = vsub.f32 %v138, %v181
    %v190 = vsub.f32 %v139, %v182
    %v191 = vsub.f32 %v140, %v183
    %v192 = vsub.f32 %v141, %v184
    %v193 = vsub.f32 %v142, %v185
    %v194 = vsub.f32 %v143, %v186
    %v195 = vsub.f32 %v144, %v187
    %v196 = vmul.f32 %v188, %v188
    %v197 = vmul.f32 %v189, %v189
    %v198 = vmul.f32 %v190, %v190
    %v199 = vmul.f32 %v191, %v191
    %v200 = vmul.f32 %v192, %v192
    %v201 = vmul.f32 %v193, %v193
    %v202 = vmul.f32 %v194, %v194
    %v203 = vmul.f32 %v195, %v195
    %vm204 = vcmp.lt.s32.totalorder %v146, 11
    %vm205 = vcmp.lt.s32.totalorder %v147, 11
    %v206 = vsel %vm204, %v196, 0.0
    %v207 = vsel %vm204, %v197, 0.0
    %v208 = vsel %vm205, %v198, 0.0
    %v209 = vsel %vm205, %v199, 0.0
    %v210 = vsel %vm204, %v200, 0.0
    %v211 = vsel %vm204, %v201, 0.0
    %v212 = vsel %vm205, %v202, 0.0
    %v213 = vsel %vm205, %v203, 0.0
    %v214 = vadd.f32 %v206, %v210
    %v215 = vadd.f32 %v207, %v211
    %v216 = vsel %vm32, %v208, 0.0
    %v217 = vsel %vm32, %v212, 0.0
    %v218 = vadd.f32 %v216, %v217
    %v219 = vsel %vm32, %v209, 0.0
    %v220 = vsel %vm32, %v213, 0.0
    %v221 = vadd.f32 %v219, %v220
    %v222 = vld [vmem:[#allocation2] sm:$0x1]
    %v223 = vadd.f32 %v214, %v215
    %v224 = vsel %vm32, %v218, 0.0
    %v225 = vadd.f32 %v223, %v224
    %v226 = vsel %vm32, %v221, 0.0
    %v227 = vadd.f32 %v225, %v226
    %228 = vadd.xlane.f32.xlu0 %v227
    %v229 = vpop.xlane.xlu0 %228
    %v230 = vrot.slane %v229, 4
    %v231 = vadd.f32 %v229, %v230
    %v232 = vrot.slane %v231, 2
    %v233 = vadd.f32 %v231, %v232
    %v234 = vrot.slane %v233, 1
    %v235 = vadd.f32 %v233, %v234
    %s236 = vtos %v235
    %v237 = vstv %s236
    %v238 = vadd.f32 %v222, %v237
    %vm239 = vcmask 0
    %240 = vst.msk [vmem:[#allocation2] sm:$0x1] %vm239, %v238
    // Predicated region
    $region14: #{tpu_custom_call.1} parent=1 // pred_check
      _
    $region15: #{tpu_custom_call.1} parent=1 // pred_check_branch
      %242 = sbr.rel (0) target = $region17
    $region16: #{tpu_custom_call.1} parent=1 // pred_region
      %s244 = ssub.s32 16, 16
      %245 = vsyncadd [#allocation3], %s244
      %s247 = sshll.u32 [#allocation2], 4
      %s248 = int_to_ptr.vmem [resolvable:$true] %s247
      %250 = dma.vmem_to_hbm [thread:$0]  %s248, 16, %s2, [#allocation3]
    $region17: #{tpu_custom_call.1} parent=1 // pred_fallthru
      _
    // Predicated region
    $region18: #{tpu_custom_call.1} parent=1 // pred_check
      _
    $region19: #{tpu_custom_call.1} parent=1 // pred_check_branch
      %252 = sbr.rel (0) target = $region21
    $region20: #{tpu_custom_call.1} parent=1 // pred_region
      %253 = dma.done [#allocation3], 16
    $region21: #{tpu_custom_call.1} parent=1 // pred_fallthru
      _
    %254 = vsyncpa [#allocation3], 1

</llo_original>
